<compile_context>
chip_gen: v5e
topology: v5e:2x2
jax: 0.10.0
libtpu: 0.0.40
codegen_flags: <defaults>
</compile_context>

<pallas_src>
import jax
import jax.numpy as jnp
from jax.experimental import pallas as pl
from jax.experimental.pallas import tpu as pltpu

IN_FEATURES = 784
OUT_FEATURES = 256
TILE_B = 1024


def encoder_fc_kernel(x_ref, w_ref, b_ref, o_ref):
    # x_ref: (tb, 784) native dtype   w_ref: (784, 256) bf16
    # b_ref: (1, 256)  f32            o_ref: (tb, 256)  out_dtype
    x = x_ref[...].astype(jnp.bfloat16)  # free VPU work hidden under the DMA
    acc = jnp.dot(x, w_ref[...], preferred_element_type=jnp.float32)
    o_ref[...] = jnp.tanh(acc + b_ref[...]).astype(o_ref.dtype)


def _choose_tile_b(b, tile_b):
    """Pick the batch tile.

    - Small batches (<= 256): one full-extent block (grid of 1).
    - Larger batches: guarantee >= 2 grid steps (so v7x's two TensorCores both
      get work), rounded to a 256-multiple, capped at tile_b.
    """
    if b <= 256:
        return b
    half = pl.cdiv(b, 2)
    half_rounded = ((half + 255) // 256) * 256
    return min(tile_b, half_rounded)


def ae_encoder_fc(x, weight_t, bias, *, tile_b=TILE_B, out_dtype=jnp.float32):
    """x: (B, ...) flattened to (B, 784); weight_t: (784, 256); bias: (256,) or (1, 256)."""
    b = x.shape[0]
    x2d = x.reshape(b, IN_FEATURES)  # keep native dtype; cast happens in-kernel

    tb = _choose_tile_b(b, tile_b)
    grid = (pl.cdiv(b, tb),)

    w_bf16 = weight_t.astype(jnp.bfloat16)
    b_f32 = bias.reshape(1, OUT_FEATURES).astype(jnp.float32)

    out_itemsize = jnp.dtype(out_dtype).itemsize
    cost = pl.CostEstimate(
        flops=2 * b * IN_FEATURES * OUT_FEATURES,
        transcendentals=b * OUT_FEATURES,
        bytes_accessed=(
            b * IN_FEATURES * x2d.dtype.itemsize          # x read
            + IN_FEATURES * OUT_FEATURES * 2              # W (bf16) read
            + OUT_FEATURES * 4                            # bias read
            + b * OUT_FEATURES * out_itemsize             # out write
        ),
    )

    return pl.pallas_call(
        encoder_fc_kernel,
        out_shape=jax.ShapeDtypeStruct((b, OUT_FEATURES), out_dtype),
        grid=grid,
        in_specs=[
            pl.BlockSpec((tb, IN_FEATURES), lambda i: (i, 0)),            # x tile streams
            pl.BlockSpec((IN_FEATURES, OUT_FEATURES), lambda i: (0, 0)),  # W resident
            pl.BlockSpec((1, OUT_FEATURES), lambda i: (0, 0)),            # bias resident
        ],
        out_specs=pl.BlockSpec((tb, OUT_FEATURES), lambda i: (i, 0)),
        compiler_params=pltpu.CompilerParams(
            dimension_semantics=("parallel",),
        ),
        cost_estimate=cost,
    )(x2d, w_bf16, b_f32)


def _reference_f32(x, weight_t, bias):
    b = x.shape[0]
    x2d = x.reshape(b, IN_FEATURES).astype(jnp.float32)
    return jnp.tanh(x2d @ weight_t.astype(jnp.float32) + bias.reshape(1, -1))


if __name__ == "__main__":
    key = jax.random.PRNGKey(0)
    k_x, k_w, k_b = jax.random.split(key, 3)

    # Deterministic synthetic parameters (shapes from nn.Linear(784, 256)).
    # PyTorch weight is (256, 784); we store its transpose (784, 256).
    bound = 1.0 / (IN_FEATURES ** 0.5)
    weight_t = jax.random.uniform(
        k_w, (IN_FEATURES, OUT_FEATURES), jnp.float32, -bound, bound
    )
    bias = jax.random.uniform(
        k_b, (1, OUT_FEATURES), jnp.float32, -bound, bound
    )

    # Small MNIST-like input: (B, C, H, W) = (2, 1, 28, 28) -> flattens to 784.
    x = jax.random.normal(k_x, (2, 1, 28, 28), jnp.float32)

    out = ae_encoder_fc(x, weight_t, bias)
    out = jax.block_until_ready(out)

    ref = _reference_f32(x, weight_t, bias)
    assert out.shape == (2, OUT_FEATURES)
    # bf16 matmul inputs with f32 accumulation -> ~1e-3 level error vs f32 ref.
    assert jnp.allclose(out, ref, atol=2e-2, rtol=2e-2), (
        float(jnp.max(jnp.abs(out - ref)))
    )

    print("KERNEL_OK")
</pallas_src>

<mosaic_0001>
module attributes {stable_mosaic.version = 11 : i64} {
  func.func @encoder_fc_kernel(%arg0: i32, %arg1: memref<2x784xf32, #tpu.memory_space<vmem>>, %arg2: memref<784x256xbf16, #tpu.memory_space<vmem>>, %arg3: memref<1x256xf32, #tpu.memory_space<vmem>>, %arg4: memref<2x256xf32, #tpu.memory_space<vmem>>) attributes {dimension_semantics = [#tpu.dimension_semantics<parallel>], iteration_bounds = array<i64: 1>, scalar_prefetch = 0 : i64, scratch_operands = 0 : i64, tpu.core_type = #tpu.core_type<tc>, window_params = [{transform_indices = @transform_0, window_bounds = array<i64: 2, 784>}, {pipeline_mode = #tpu.pipeline_mode<synchronous>, transform_indices = @transform_1, window_bounds = array<i64: 784, 256>}, {pipeline_mode = #tpu.pipeline_mode<synchronous>, transform_indices = @transform_2, window_bounds = array<i64: 1, 256>}, {transform_indices = @transform_3, window_bounds = array<i64: 2, 256>}]} {
    %c0 = arith.constant 0 : index
    %c0_0 = arith.constant 0 : index
    %0 = vector.load %arg1[%c0, %c0_0] : memref<2x784xf32, #tpu.memory_space<vmem>>, vector<2x784xf32>
    %1 = arith.truncf %0 : vector<2x784xf32> to vector<2x784xbf16>
    %c0_1 = arith.constant 0 : index
    %c0_2 = arith.constant 0 : index
    %2 = vector.load %arg2[%c0_1, %c0_2] : memref<784x256xbf16, #tpu.memory_space<vmem>>, vector<784x256xbf16>
    %cst = arith.constant dense<0.000000e+00> : vector<2x256xf32>
    %3 = tpu.matmul %1, %2, %cst {dimension_numbers = #tpu.dot_dimension_numbers<[1], [0], [0], [1], [0, 0, 1, 1], [], []>} : vector<2x784xbf16>, vector<784x256xbf16>, vector<2x256xf32> -> vector<2x256xf32>
    %c0_3 = arith.constant 0 : index
    %c0_4 = arith.constant 0 : index
    %4 = vector.load %arg3[%c0_3, %c0_4] : memref<1x256xf32, #tpu.memory_space<vmem>>, vector<1x256xf32>
    %5 = vector.broadcast %4 : vector<1x256xf32> to vector<2x256xf32>
    %6 = arith.addf %3, %5 : vector<2x256xf32>
    %7 = math.tanh %6 : vector<2x256xf32>
    %c0_5 = arith.constant 0 : index
    %c0_6 = arith.constant 0 : index
    %8 = vector.load %arg4[%c0_5, %c0_6] : memref<2x256xf32, #tpu.memory_space<vmem>>, vector<2x256xf32>
    tpu.vector_store %arg4[%c0_5, %c0_6], %7 {strides = array<i32>} : memref<2x256xf32, #tpu.memory_space<vmem>>, vector<2x256xf32>,
    return
  }
  func.func @transform_0(%arg0: i32) -> (i32, i32) {
    %c0_i32 = arith.constant 0 : i32
    %c0_i32_0 = arith.constant 0 : i32
    return %arg0, %c0_i32 : i32, i32
  }
  func.func @transform_1(%arg0: i32) -> (i32, i32) {
    %c0_i32 = arith.constant 0 : i32
    %c0_i32_0 = arith.constant 0 : i32
    %c0_i32_1 = arith.constant 0 : i32
    return %c0_i32, %c0_i32_0 : i32, i32
  }
  func.func @transform_2(%arg0: i32) -> (i32, i32) {
    %c0_i32 = arith.constant 0 : i32
    %c0_i32_0 = arith.constant 0 : i32
    %c0_i32_1 = arith.constant 0 : i32
    return %c0_i32, %c0_i32_0 : i32, i32
  }
  func.func @transform_3(%arg0: i32) -> (i32, i32) {
    %c0_i32 = arith.constant 0 : i32
    %c0_i32_0 = arith.constant 0 : i32
    return %arg0, %c0_i32 : i32, i32
  }
}

</mosaic_0001>

<llo_original>
// kernel: tpu_custom_call.1
$region0: #{tpu_custom_call.1}
  #allocation0 [shape = 'u32[]', space=smem, size = 0x4, offset = 0x4, fixed_abs, tag = 'smem constant byte address 0x4 - core index']
  #allocation1 [shape = 'u32[72,128]{1,0:T(1,128)}', space=vmem, size = 0x9000, scoped, tag = 'internal scratch']
  %s0 = inlined_call_operand.hbm [shape: f32[2,784], index: 0, kind: input, shape index: {}]
  %s1 = inlined_call_operand.hbm [shape: bf16[784,256], index: 1, kind: input, shape index: {}]
  %s2 = inlined_call_operand.hbm [shape: f32[1,256], index: 2, kind: input, shape index: {}]
  %s3 = inlined_call_operand.hbm [shape: f32[2,256], index: 3, kind: output, shape index: {}]
  %s4 = sld [smem:[#allocation0]]
  $region34: #{tpu_custom_call.1} parent=0
    _
  %s6 = ssub.s32 1, %s4
  %s7 = scalar_select 0, %s6, %s4
  $region1: #{tpu_custom_call.1} parent=0
    #allocation2 [shape = 'u8[7168]{0}', space=vmem, size = 0x1c00, scoped, tag = 'input window, operand 0, single buffered']
    #allocation3 [shape = 's32[1]{0}', space=sflag, size = 0x4, scoped, tag = 'scoped memory for tpu_custom_call.1']
    #allocation4 [shape = 's32[1]{0}', space=sflag, size = 0x4, scoped, tag = 'scoped memory for tpu_custom_call.1']
    #allocation5 [shape = 'u8[401408]{0}', space=vmem, size = 0x62000, scoped, tag = 'input window, operand 1, single buffered']
    #allocation6 [shape = 's32[1]{0}', space=sflag, size = 0x4, scoped, tag = 'scoped memory for tpu_custom_call.1']
    #allocation7 [shape = 'u8[1024]{0}', space=vmem, size = 0x400, scoped, tag = 'input window, operand 2, single buffered']
    #allocation8 [shape = 'u8[2048]{0}', space=vmem, size = 0x800, scoped, tag = 'output window, operand 0, single buffered']
    %8 = vsyncpa [#allocation3], 0
    %9 = vsyncpa [#allocation6], 0
    %10 = vsyncpa [#allocation4], 0
    // Predicated region
    $region2: #{tpu_custom_call.1} parent=1 // pred_check
      _
    $region3: #{tpu_custom_call.1} parent=1 // pred_check_branch
      %12 = sbr.rel (0) target = $region5
    $region4: #{tpu_custom_call.1} parent=1 // pred_region
      %14 = vsyncadd [#allocation3], 0
      %s16 = sshll.u32 %s0, 4
      %s17 = int_to_ptr.hbm [resolvable:$true] %s16
      %s18 = sshll.u32 [#allocation2], 4
      %s19 = int_to_ptr.vmem [resolvable:$true] %s18
      %21 = dma.hbm_to_vmem [thread:$0]  %s17, 224, %s19, [#allocation3]
    $region5: #{tpu_custom_call.1} parent=1 // pred_fallthru
      _
    // Predicated region
    $region6: #{tpu_custom_call.1} parent=1 // pred_check
      _
    $region7: #{tpu_custom_call.1} parent=1 // pred_check_branch
      %23 = sbr.rel (0) target = $region9
    $region8: #{tpu_custom_call.1} parent=1 // pred_region
      %25 = vsyncadd [#allocation6], 0
      %s26 = sshll.u32 %s1, 4
      %s27 = int_to_ptr.hbm [resolvable:$true] %s26
      %s28 = sshll.u32 [#allocation5], 4
      %s29 = int_to_ptr.vmem [resolvable:$true] %s28
      %34 = dma.hbm_to_vmem [thread:$0]  %s27, 12544, %s29, [#allocation6], 128, 128, 8
    $region9: #{tpu_custom_call.1} parent=1 // pred_fallthru
      _
    // Predicated region
    $region10: #{tpu_custom_call.1} parent=1 // pred_check
      _
    $region11: #{tpu_custom_call.1} parent=1 // pred_check_branch
      %36 = sbr.rel (0) target = $region13
    $region12: #{tpu_custom_call.1} parent=1 // pred_region
      %38 = vsyncadd [#allocation6], 0
      %s40 = sshll.u32 %s2, 4
      %s41 = int_to_ptr.hbm [resolvable:$true] %s40
      %s42 = sshll.u32 [#allocation7], 4
      %s43 = int_to_ptr.vmem [resolvable:$true] %s42
      %45 = dma.hbm_to_vmem [thread:$0]  %s41, 32, %s43, [#allocation6]
    $region13: #{tpu_custom_call.1} parent=1 // pred_fallthru
      _
    // Predicated region
    $region14: #{tpu_custom_call.1} parent=1 // pred_check
      _
    $region15: #{tpu_custom_call.1} parent=1 // pred_check_branch
      %47 = sbr.rel (0) target = $region17
    $region16: #{tpu_custom_call.1} parent=1 // pred_region
      %49 = dma.done [#allocation3], 224
    $region17: #{tpu_custom_call.1} parent=1 // pred_fallthru
      _
    // Predicated region
    $region18: #{tpu_custom_call.1} parent=1 // pred_check
      _
    $region19: #{tpu_custom_call.1} parent=1 // pred_check_branch
      %51 = sbr.rel (0) target = $region21
    $region20: #{tpu_custom_call.1} parent=1 // pred_region
      %53 = dma.done [#allocation6], 12544
    $region21: #{tpu_custom_call.1} parent=1 // pred_fallthru
      _
    // Predicated region
    $region22: #{tpu_custom_call.1} parent=1 // pred_check
      _
    $region23: #{tpu_custom_call.1} parent=1 // pred_check_branch
      %55 = sbr.rel (0) target = $region25
    $region24: #{tpu_custom_call.1} parent=1 // pred_region
      %57 = dma.done [#allocation6], 32
    $region25: #{tpu_custom_call.1} parent=1 // pred_fallthru
      _
    %v59 = vld [vmem:[#allocation2] sm:$0xff]
    %v60 = vld [vmem:[#allocation2 + $0x8] sm:$0x3f]
    %63 = vst [vmem:[#allocation1] ss:$4 sm:$0xff] %v59
    %s64 = scalar_lea.vmem [#allocation1], 32
    %65 = vst [vmem:[%s64] ss:$4 sm:$0xff] %v60
    %v66 = vld.sshfl [vmem:[#allocation1] sm:$0xff pattern:$0x73625140]
    %v67 = vld.sshfl [vmem:[#allocation1 + $0x8] sm:$0xff pattern:$0x73625140]
    %v68 = vld.sshfl [vmem:[#allocation1 + $0x10] sm:$0xff pattern:$0x73625140]
    %v69 = vld.sshfl [vmem:[#allocation1 + $0x18] sm:$0xff pattern:$0x73625140]
    %v70 = vld.sshfl [vmem:[#allocation1 + $0x20] sm:$0xff pattern:$0x73625140]
    %v71 = vld.sshfl [vmem:[#allocation1 + $0x28] sm:$0xff pattern:$0x73625140]
    %v72 = vld.sshfl [vmem:[#allocation1 + $0x30] sm:$0xff pattern:$0x73625140]
    %v80 = vpack.c.bf16 %v66, %v66
    %v81 = vpack.c.bf16 %v67, %v67
    %v82 = vpack.c.bf16 %v68, %v68
    %v83 = vpack.c.bf16 %v69, %v69
    %v84 = vpack.c.bf16 %v70, %v70
    %v85 = vpack.c.bf16 %v71, %v71
    %v86 = vpack.c.bf16 %v72, %v72
    %v87 = vld [vmem:[#allocation5] sm:$0xff]
    %v88 = vld [vmem:[#allocation5 + $0x8] sm:$0xff]
    %v89 = vld [vmem:[#allocation5 + $0x10] sm:$0xff]
    %v90 = vld [vmem:[#allocation5 + $0x18] sm:$0xff]
    %v91 = vld [vmem:[#allocation5 + $0x20] sm:$0xff]
    %v92 = vld [vmem:[#allocation5 + $0x28] sm:$0xff]
    %v93 = vld [vmem:[#allocation5 + $0x30] sm:$0xff]
    %v94 = vld [vmem:[#allocation5 + $0x38] sm:$0xff]
    %v95 = vld [vmem:[#allocation5 + $0x40] sm:$0xff]
    %v96 = vld [vmem:[#allocation5 + $0x48] sm:$0xff]
    %v97 = vld [vmem:[#allocation5 + $0x50] sm:$0xff]
    %v98 = vld [vmem:[#allocation5 + $0x58] sm:$0xff]
    %v99 = vld [vmem:[#allocation5 + $0x60] sm:$0xff]
    %v100 = vld [vmem:[#allocation5 + $0x68] sm:$0xff]
    %v101 = vld [vmem:[#allocation5 + $0x70] sm:$0xff]
    %v102 = vld [vmem:[#allocation5 + $0x78] sm:$0xff]
    %v103 = vld [vmem:[#allocation5 + $0x80] sm:$0xff]
    %v104 = vld [vmem:[#allocation5 + $0x88] sm:$0xff]
    %v105 = vld [vmem:[#allocation5 + $0x90] sm:$0xff]
    %v106 = vld [vmem:[#allocation5 + $0x98] sm:$0xff]
    %v107 = vld [vmem:[#allocation5 + $0xa0] sm:$0xff]
    %v108 = vld [vmem:[#allocation5 + $0xa8] sm:$0xff]
    %v109 = vld [vmem:[#allocation5 + $0xb0] sm:$0xff]
    %v110 = vld [vmem:[#allocation5 + $0xb8] sm:$0xff]
    %v111 = vld [vmem:[#allocation5 + $0xc0] sm:$0xff]
    %v112 = vld [vmem:[#allocation5 + $0xc8] sm:$0xff]
    %v113 = vld [vmem:[#allocation5 + $0xd0] sm:$0xff]
    %v114 = vld [vmem:[#allocation5 + $0xd8] sm:$0xff]
    %v115 = vld [vmem:[#allocation5 + $0xe0] sm:$0xff]
    %v116 = vld [vmem:[#allocation5 + $0xe8] sm:$0xff]
    %v117 = vld [vmem:[#allocation5 + $0xf0] sm:$0xff]
    %v118 = vld [vmem:[#allocation5 + $0xf8] sm:$0xff]
    %v119 = vld [vmem:[#allocation5 + $0x100] sm:$0xff]
    %v120 = vld [vmem:[#allocation5 + $0x108] sm:$0xff]
    %v121 = vld [vmem:[#allocation5 + $0x110] sm:$0xff]
    %v122 = vld [vmem:[#allocation5 + $0x118] sm:$0xff]
    %v123 = vld [vmem:[#allocation5 + $0x120] sm:$0xff]
    %v124 = vld [vmem:[#allocation5 + $0x128] sm:$0xff]
    %v125 = vld [vmem:[#allocation5 + $0x130] sm:$0xff]
    %v126 = vld [vmem:[#allocation5 + $0x138] sm:$0xff]
    %v127 = vld [vmem:[#allocation5 + $0x140] sm:$0xff]
    %v128 = vld [vmem:[#allocation5 + $0x148] sm:$0xff]
    %v129 = vld [vmem:[#allocation5 + $0x150] sm:$0xff]
    %v130 = vld [vmem:[#allocation5 + $0x158] sm:$0xff]
    %v131 = vld [vmem:[#allocation5 + $0x160] sm:$0xff]
    %v132 = vld [vmem:[#allocation5 + $0x168] sm:$0xff]
    %v133 = vld [vmem:[#allocation5 + $0x170] sm:$0xff]
    %v134 = vld [vmem:[#allocation5 + $0x178] sm:$0xff]
    %v135 = vld [vmem:[#allocation5 + $0x180] sm:$0xff]
    %v136 = vld [vmem:[#allocation5 + $0x188] sm:$0xff]
    %v137 = vld [vmem:[#allocation5 + $0x190] sm:$0xff]
    %v138 = vld [vmem:[#allocation5 + $0x198] sm:$0xff]
    %v139 = vld [vmem:[#allocation5 + $0x1a0] sm:$0xff]
    %v140 = vld [vmem:[#allocation5 + $0x1a8] sm:$0xff]
    %v141 = vld [vmem:[#allocation5 + $0x1b0] sm:$0xff]
    %v142 = vld [vmem:[#allocation5 + $0x1b8] sm:$0xff]
    %v143 = vld [vmem:[#allocation5 + $0x1c0] sm:$0xff]
    %v144 = vld [vmem:[#allocation5 + $0x1c8] sm:$0xff]
    %v145 = vld [vmem:[#allocation5 + $0x1d0] sm:$0xff]
    %v146 = vld [vmem:[#allocation5 + $0x1d8] sm:$0xff]
    %v147 = vld [vmem:[#allocation5 + $0x1e0] sm:$0xff]
    %v148 = vld [vmem:[#allocation5 + $0x1e8] sm:$0xff]
    %v149 = vld [vmem:[#allocation5 + $0x1f0] sm:$0xff]
    %v150 = vld [vmem:[#allocation5 + $0x1f8] sm:$0xff]
    %v151 = vld [vmem:[#allocation5 + $0x200] sm:$0xff]
    %v152 = vld [vmem:[#allocation5 + $0x208] sm:$0xff]
    %v153 = vld [vmem:[#allocation5 + $0x210] sm:$0xff]
    %v154 = vld [vmem:[#allocation5 + $0x218] sm:$0xff]
    %v155 = vld [vmem:[#allocation5 + $0x220] sm:$0xff]
    %v156 = vld [vmem:[#allocation5 + $0x228] sm:$0xff]
    %v157 = vld [vmem:[#allocation5 + $0x230] sm:$0xff]
    %v158 = vld [vmem:[#allocation5 + $0x238] sm:$0xff]
    %v159 = vld [vmem:[#allocation5 + $0x240] sm:$0xff]
    %v160 = vld [vmem:[#allocation5 + $0x248] sm:$0xff]
    %v161 = vld [vmem:[#allocation5 + $0x250] sm:$0xff]
    %v162 = vld [vmem:[#allocation5 + $0x258] sm:$0xff]
    %v163 = vld [vmem:[#allocation5 + $0x260] sm:$0xff]
    %v164 = vld [vmem:[#allocation5 + $0x268] sm:$0xff]
    %v165 = vld [vmem:[#allocation5 + $0x270] sm:$0xff]
    %v166 = vld [vmem:[#allocation5 + $0x278] sm:$0xff]
    %v167 = vld [vmem:[#allocation5 + $0x280] sm:$0xff]
    %v168 = vld [vmem:[#allocation5 + $0x288] sm:$0xff]
    %v169 = vld [vmem:[#allocation5 + $0x290] sm:$0xff]
    %v170 = vld [vmem:[#allocation5 + $0x298] sm:$0xff]
    %v171 = vld [vmem:[#allocation5 + $0x2a0] sm:$0xff]
    %v172 = vld [vmem:[#allocation5 + $0x2a8] sm:$0xff]
    %v173 = vld [vmem:[#allocation5 + $0x2b0] sm:$0xff]
    %v174 = vld [vmem:[#allocation5 + $0x2b8] sm:$0xff]
    %v175 = vld [vmem:[#allocation5 + $0x2c0] sm:$0xff]
    %v176 = vld [vmem:[#allocation5 + $0x2c8] sm:$0xff]
    %v177 = vld [vmem:[#allocation5 + $0x2d0] sm:$0xff]
    %v178 = vld [vmem:[#allocation5 + $0x2d8] sm:$0xff]
    %v179 = vld [vmem:[#allocation5 + $0x2e0] sm:$0xff]
    %v180 = vld [vmem:[#allocation5 + $0x2e8] sm:$0xff]
    %v181 = vld [vmem:[#allocation5 + $0x2f0] sm:$0xff]
    %v182 = vld [vmem:[#allocation5 + $0x2f8] sm:$0xff]
    %v183 = vld [vmem:[#allocation5 + $0x300] sm:$0xff]
    %v184 = vld [vmem:[#allocation5 + $0x308] sm:$0xff]
    %v185 = vld [vmem:[#allocation7] sm:$0x3]
    %v187 = vperm.slane %v185, 0
    %v188 = vperm.slane %v185, 1
    %v289 = vunpack.c.l.b16 %v87
    %v290 = vunpack.c.h.b16 %v87
    %v291 = vunpack.c.l.b16 %v88
    %v292 = vunpack.c.h.b16 %v88
    %v293 = vunpack.c.l.b16 %v89
    %v294 = vunpack.c.h.b16 %v89
    %v295 = vunpack.c.l.b16 %v90
    %v296 = vunpack.c.h.b16 %v90
    %v297 = vunpack.c.l.b16 %v91
    %v298 = vunpack.c.h.b16 %v91
    %v299 = vunpack.c.l.b16 %v92
    %v300 = vunpack.c.h.b16 %v92
    %v301 = vunpack.c.l.b16 %v93
    %v302 = vunpack.c.h.b16 %v93
    %v303 = vunpack.c.l.b16 %v94
    %v304 = vunpack.c.h.b16 %v94
    %v305 = vunpack.c.l.b16 %v95
    %v306 = vunpack.c.h.b16 %v95
    %v307 = vunpack.c.l.b16 %v96
    %v308 = vunpack.c.h.b16 %v96
    %v309 = vunpack.c.l.b16 %v97
    %v310 = vunpack.c.h.b16 %v97
    %v311 = vunpack.c.l.b16 %v98
    %v312 = vunpack.c.h.b16 %v98
    %v313 = vunpack.c.l.b16 %v99
    %v314 = vunpack.c.h.b16 %v99
    %v315 = vunpack.c.l.b16 %v100
    %v316 = vunpack.c.h.b16 %v100
    %v317 = vunpack.c.l.b16 %v101
    %v318 = vunpack.c.h.b16 %v101
    %v319 = vunpack.c.l.b16 %v102
    %v320 = vunpack.c.h.b16 %v102
    %v321 = vunpack.c.l.b16 %v103
    %v322 = vunpack.c.h.b16 %v103
    %v323 = vunpack.c.l.b16 %v104
    %v324 = vunpack.c.h.b16 %v104
    %v325 = vunpack.c.l.b16 %v105
    %v326 = vunpack.c.h.b16 %v105
    %v327 = vunpack.c.l.b16 %v106
    %v328 = vunpack.c.h.b16 %v106
    %v329 = vunpack.c.l.b16 %v107
    %v330 = vunpack.c.h.b16 %v107
    %v331 = vunpack.c.l.b16 %v108
    %v332 = vunpack.c.h.b16 %v108
    %v333 = vunpack.c.l.b16 %v109
    %v334 = vunpack.c.h.b16 %v109
    %v335 = vunpack.c.l.b16 %v110
    %v336 = vunpack.c.h.b16 %v110
    %v337 = vunpack.c.l.b16 %v111
    %v338 = vunpack.c.h.b16 %v111
    %v339 = vunpack.c.l.b16 %v112
    %v340 = vunpack.c.h.b16 %v112
    %v341 = vunpack.c.l.b16 %v113
    %v342 = vunpack.c.h.b16 %v113
    %v343 = vunpack.c.l.b16 %v114
    %v344 = vunpack.c.h.b16 %v114
    %v345 = vunpack.c.l.b16 %v115
    %v346 = vunpack.c.h.b16 %v115
    %v347 = vunpack.c.l.b16 %v116
    %v348 = vunpack.c.h.b16 %v116
    %v349 = vunpack.c.l.b16 %v117
    %v350 = vunpack.c.h.b16 %v117
    %v351 = vunpack.c.l.b16 %v118
    %v352 = vunpack.c.h.b16 %v118
    %v353 = vunpack.c.l.b16 %v119
    %v354 = vunpack.c.h.b16 %v119
    %v355 = vunpack.c.l.b16 %v120
    %v356 = vunpack.c.h.b16 %v120
    %v357 = vunpack.c.l.b16 %v121
    %v358 = vunpack.c.h.b16 %v121
    %v359 = vunpack.c.l.b16 %v122
    %v360 = vunpack.c.h.b16 %v122
    %v361 = vunpack.c.l.b16 %v123
    %v362 = vunpack.c.h.b16 %v123
    %v363 = vunpack.c.l.b16 %v124
    %v364 = vunpack.c.h.b16 %v124
    %v365 = vunpack.c.l.b16 %v125
    %v366 = vunpack.c.h.b16 %v125
    %v367 = vunpack.c.l.b16 %v126
    %v368 = vunpack.c.h.b16 %v126
    %v369 = vunpack.c.l.b16 %v127
    %v370 = vunpack.c.h.b16 %v127
    %v371 = vunpack.c.l.b16 %v128
    %v372 = vunpack.c.h.b16 %v128
    %v373 = vunpack.c.l.b16 %v129
    %v374 = vunpack.c.h.b16 %v129
    %v375 = vunpack.c.l.b16 %v130
    %v376 = vunpack.c.h.b16 %v130
    %v377 = vunpack.c.l.b16 %v131
    %v378 = vunpack.c.h.b16 %v131
    %v379 = vunpack.c.l.b16 %v132
    %v380 = vunpack.c.h.b16 %v132
    %v381 = vunpack.c.l.b16 %v133
    %v382 = vunpack.c.h.b16 %v133
    %v383 = vunpack.c.l.b16 %v134
    %v384 = vunpack.c.h.b16 %v134
    %v385 = vunpack.c.l.b16 %v135
    %v386 = vunpack.c.h.b16 %v135
    %v387 = vunpack.c.l.b16 %v136
    %v388 = vunpack.c.h.b16 %v136
    %v389 = vunpack.c.l.b16 %v137
    %v390 = vunpack.c.h.b16 %v137
    %v391 = vunpack.c.l.b16 %v138
    %v392 = vunpack.c.h.b16 %v138
    %v393 = vunpack.c.l.b16 %v139
    %v394 = vunpack.c.h.b16 %v139
    %v395 = vunpack.c.l.b16 %v140
    %v396 = vunpack.c.h.b16 %v140
    %v397 = vunpack.c.l.b16 %v141
    %v398 = vunpack.c.h.b16 %v141
    %v399 = vunpack.c.l.b16 %v142
    %v400 = vunpack.c.h.b16 %v142
    %v401 = vunpack.c.l.b16 %v143
    %v402 = vunpack.c.h.b16 %v143
    %v403 = vunpack.c.l.b16 %v144
    %v404 = vunpack.c.h.b16 %v144
    %v405 = vunpack.c.l.b16 %v145
    %v406 = vunpack.c.h.b16 %v145
    %v407 = vunpack.c.l.b16 %v146
    %v408 = vunpack.c.h.b16 %v146
    %v409 = vunpack.c.l.b16 %v147
    %v410 = vunpack.c.h.b16 %v147
    %v411 = vunpack.c.l.b16 %v148
    %v412 = vunpack.c.h.b16 %v148
    %v413 = vunpack.c.l.b16 %v149
    %v414 = vunpack.c.h.b16 %v149
    %v415 = vunpack.c.l.b16 %v150
    %v416 = vunpack.c.h.b16 %v150
    %v417 = vunpack.c.l.b16 %v151
    %v418 = vunpack.c.h.b16 %v151
    %v419 = vunpack.c.l.b16 %v152
    %v420 = vunpack.c.h.b16 %v152
    %v421 = vunpack.c.l.b16 %v153
    %v422 = vunpack.c.h.b16 %v153
    %v423 = vunpack.c.l.b16 %v154
    %v424 = vunpack.c.h.b16 %v154
    %v425 = vunpack.c.l.b16 %v155
    %v426 = vunpack.c.h.b16 %v155
    %v427 = vunpack.c.l.b16 %v156
    %v428 = vunpack.c.h.b16 %v156
    %v429 = vunpack.c.l.b16 %v157
    %v430 = vunpack.c.h.b16 %v157
    %v431 = vunpack.c.l.b16 %v158
    %v432 = vunpack.c.h.b16 %v158
    %v433 = vunpack.c.l.b16 %v159
    %v434 = vunpack.c.h.b16 %v159
    %v435 = vunpack.c.l.b16 %v160
    %v436 = vunpack.c.h.b16 %v160
    %v437 = vunpack.c.l.b16 %v161
    %v438 = vunpack.c.h.b16 %v161
    %v439 = vunpack.c.l.b16 %v162
    %v440 = vunpack.c.h.b16 %v162
    %v441 = vunpack.c.l.b16 %v163
    %v442 = vunpack.c.h.b16 %v163
    %v443 = vunpack.c.l.b16 %v164
    %v444 = vunpack.c.h.b16 %v164
    %v445 = vunpack.c.l.b16 %v165
    %v446 = vunpack.c.h.b16 %v165
    %v447 = vunpack.c.l.b16 %v166
    %v448 = vunpack.c.h.b16 %v166
    %v449 = vunpack.c.l.b16 %v167
    %v450 = vunpack.c.h.b16 %v167
    %v451 = vunpack.c.l.b16 %v168
    %v452 = vunpack.c.h.b16 %v168
    %v453 = vunpack.c.l.b16 %v169
    %v454 = vunpack.c.h.b16 %v169
    %v455 = vunpack.c.l.b16 %v170
    %v456 = vunpack.c.h.b16 %v170
    %v457 = vunpack.c.l.b16 %v171
    %v458 = vunpack.c.h.b16 %v171
    %v459 = vunpack.c.l.b16 %v172
    %v460 = vunpack.c.h.b16 %v172
    %v461 = vunpack.c.l.b16 %v173
    %v462 = vunpack.c.h.b16 %v173
    %v463 = vunpack.c.l.b16 %v174
    %v464 = vunpack.c.h.b16 %v174
    %v465 = vunpack.c.l.b16 %v175
    %v466 = vunpack.c.h.b16 %v175
    %v467 = vunpack.c.l.b16 %v176
    %v468 = vunpack.c.h.b16 %v176
    %v469 = vunpack.c.l.b16 %v177
    %v470 = vunpack.c.h.b16 %v177
    %v471 = vunpack.c.l.b16 %v178
    %v472 = vunpack.c.h.b16 %v178
    %v473 = vunpack.c.l.b16 %v179
    %v474 = vunpack.c.h.b16 %v179
    %v475 = vunpack.c.l.b16 %v180
    %v476 = vunpack.c.h.b16 %v180
    %v477 = vunpack.c.l.b16 %v181
    %v478 = vunpack.c.h.b16 %v181
    %v479 = vunpack.c.l.b16 %v182
    %v480 = vunpack.c.h.b16 %v182
    %v481 = vunpack.c.l.b16 %v183
    %v482 = vunpack.c.h.b16 %v183
    %v483 = vunpack.c.l.b16 %v184
    %v484 = vunpack.c.h.b16 %v184
    %v485 = vpack.c.b16 %v291, %v289
    %v486 = vpack.c.b16 %v292, %v290
    %v487 = vpack.c.b16 %v295, %v293
    %v488 = vpack.c.b16 %v296, %v294
    %v489 = vpack.c.b16 %v299, %v297
    %v490 = vpack.c.b16 %v300, %v298
    %v491 = vpack.c.b16 %v303, %v301
    %v492 = vpack.c.b16 %v304, %v302
    %v493 = vpack.c.b16 %v307, %v305
    %v494 = vpack.c.b16 %v308, %v306
    %v495 = vpack.c.b16 %v311, %v309
    %v496 = vpack.c.b16 %v312, %v310
    %v497 = vpack.c.b16 %v315, %v313
    %v498 = vpack.c.b16 %v316, %v314
    %v499 = vpack.c.b16 %v319, %v317
    %v500 = vpack.c.b16 %v320, %v318
    %v501 = vpack.c.b16 %v323, %v321
    %v502 = vpack.c.b16 %v324, %v322
    %v503 = vpack.c.b16 %v327, %v325
    %v504 = vpack.c.b16 %v328, %v326
    %v505 = vpack.c.b16 %v331, %v329
    %v506 = vpack.c.b16 %v332, %v330
    %v507 = vpack.c.b16 %v335, %v333
    %v508 = vpack.c.b16 %v336, %v334
    %v509 = vpack.c.b16 %v339, %v337
    %v510 = vpack.c.b16 %v340, %v338
    %v511 = vpack.c.b16 %v343, %v341
    %v512 = vpack.c.b16 %v344, %v342
    %v513 = vpack.c.b16 %v347, %v345
    %v514 = vpack.c.b16 %v348, %v346
    %v515 = vpack.c.b16 %v351, %v349
    %v516 = vpack.c.b16 %v352, %v350
    %v517 = vpack.c.b16 %v355, %v353
    %v518 = vpack.c.b16 %v356, %v354
    %v519 = vpack.c.b16 %v359, %v357
    %v520 = vpack.c.b16 %v360, %v358
    %v521 = vpack.c.b16 %v363, %v361
    %v522 = vpack.c.b16 %v364, %v362
    %v523 = vpack.c.b16 %v367, %v365
    %v524 = vpack.c.b16 %v368, %v366
    %v525 = vpack.c.b16 %v371, %v369
    %v526 = vpack.c.b16 %v372, %v370
    %v527 = vpack.c.b16 %v375, %v373
    %v528 = vpack.c.b16 %v376, %v374
    %v529 = vpack.c.b16 %v379, %v377
    %v530 = vpack.c.b16 %v380, %v378
    %v531 = vpack.c.b16 %v383, %v381
    %v532 = vpack.c.b16 %v384, %v382
    %v533 = vpack.c.b16 %v387, %v385
    %v534 = vpack.c.b16 %v388, %v386
    %v535 = vpack.c.b16 %v391, %v389
    %v536 = vpack.c.b16 %v392, %v390
    %v537 = vpack.c.b16 %v395, %v393
    %v538 = vpack.c.b16 %v396, %v394
    %v539 = vpack.c.b16 %v399, %v397
    %v540 = vpack.c.b16 %v400, %v398
    %v541 = vpack.c.b16 %v403, %v401
    %v542 = vpack.c.b16 %v404, %v402
    %v543 = vpack.c.b16 %v407, %v405
    %v544 = vpack.c.b16 %v408, %v406
    %v545 = vpack.c.b16 %v411, %v409
    %v546 = vpack.c.b16 %v412, %v410
    %v547 = vpack.c.b16 %v415, %v413
    %v548 = vpack.c.b16 %v416, %v414
    %v549 = vpack.c.b16 %v419, %v417
    %v550 = vpack.c.b16 %v420, %v418
    %v551 = vpack.c.b16 %v423, %v421
    %v552 = vpack.c.b16 %v424, %v422
    %v553 = vpack.c.b16 %v427, %v425
    %v554 = vpack.c.b16 %v428, %v426
    %v555 = vpack.c.b16 %v431, %v429
    %v556 = vpack.c.b16 %v432, %v430
    %v557 = vpack.c.b16 %v435, %v433
    %v558 = vpack.c.b16 %v436, %v434
    %v559 = vpack.c.b16 %v439, %v437
    %v560 = vpack.c.b16 %v440, %v438
    %v561 = vpack.c.b16 %v443, %v441
    %v562 = vpack.c.b16 %v444, %v442
    %v563 = vpack.c.b16 %v447, %v445
    %v564 = vpack.c.b16 %v448, %v446
    %v565 = vpack.c.b16 %v451, %v449
    %v566 = vpack.c.b16 %v452, %v450
    %v567 = vpack.c.b16 %v455, %v453
    %v568 = vpack.c.b16 %v456, %v454
    %v569 = vpack.c.b16 %v459, %v457
    %v570 = vpack.c.b16 %v460, %v458
    %v571 = vpack.c.b16 %v463, %v461
    %v572 = vpack.c.b16 %v464, %v462
    %v573 = vpack.c.b16 %v467, %v465
    %v574 = vpack.c.b16 %v468, %v466
    %v575 = vpack.c.b16 %v471, %v469
    %v576 = vpack.c.b16 %v472, %v470
    %v577 = vpack.c.b16 %v475, %v473
    %v578 = vpack.c.b16 %v476, %v474
    %v579 = vpack.c.b16 %v479, %v477
    %v580 = vpack.c.b16 %v480, %v478
    %v581 = vpack.c.b16 %v483, %v481
    %v582 = vpack.c.b16 %v484, %v482
    %vm681 = vcmask 130048
    %v683 = vsel %vm681, %v86, 0
    %685 = vmatpush.bf16.msra.mxu0 %v499
    %686 = vmatpush.bf16.msra.mxu0 %v497
    %687 = vmatpush.bf16.msra.mxu0 %v495
    %688 = vmatpush.bf16.msra.mxu0 %v493
    %689 = vmatpush.bf16.msra.mxu0 %v491
    %690 = vmatpush.bf16.msra.mxu0 %v489
    %691 = vmatpush.bf16.msra.mxu0 %v487
    %692 = vmatpush.bf16.msra.mxu0 %v485
    %693 = vmatmul.bf16.gmra.mxu0 %v80
    %v694 = vpop.f32.mrf.mxu0
    %v695 = vadd.f32 %v187, %v694
    %v696 = vpop.f32.mrf.mxu0
    %697 = vdwg.mxu0
    %698 = vmatpush.bf16.msra.mxu0 %v515
    %699 = vmatpush.bf16.msra.mxu0 %v513
    %700 = vmatpush.bf16.msra.mxu0 %v511
    %701 = vmatpush.bf16.msra.mxu0 %v509
    %702 = vmatpush.bf16.msra.mxu0 %v507
    %703 = vmatpush.bf16.msra.mxu0 %v505
    %704 = vmatpush.bf16.msra.mxu0 %v503
    %705 = vmatpush.bf16.msra.mxu0 %v501
    %706 = vmatmul.bf16.gmra.mxu0 %v81
    %v707 = vpop.f32.mrf.mxu0
    %v708 = vadd.f32 %v695, %v707
    %v709 = vpop.f32.mrf.mxu0
    %710 = vdwg.mxu0
    %711 = vmatpush.bf16.msra.mxu0 %v531
    %712 = vmatpush.bf16.msra.mxu0 %v529
    %713 = vmatpush.bf16.msra.mxu0 %v527
    %714 = vmatpush.bf16.msra.mxu0 %v525
    %715 = vmatpush.bf16.msra.mxu0 %v523
    %716 = vmatpush.bf16.msra.mxu0 %v521
    %717 = vmatpush.bf16.msra.mxu0 %v519
    %718 = vmatpush.bf16.msra.mxu0 %v517
    %719 = vmatmul.bf16.gmra.mxu0 %v82
    %v720 = vpop.f32.mrf.mxu0
    %v721 = vadd.f32 %v708, %v720
    %v722 = vpop.f32.mrf.mxu0
    %723 = vdwg.mxu0
    %724 = vmatpush.bf16.msra.mxu0 %v547
    %725 = vmatpush.bf16.msra.mxu0 %v545
    %726 = vmatpush.bf16.msra.mxu0 %v543
    %727 = vmatpush.bf16.msra.mxu0 %v541
    %728 = vmatpush.bf16.msra.mxu0 %v539
    %729 = vmatpush.bf16.msra.mxu0 %v537
    %730 = vmatpush.bf16.msra.mxu0 %v535
    %731 = vmatpush.bf16.msra.mxu0 %v533
    %732 = vmatmul.bf16.gmra.mxu0 %v83
    %v733 = vpop.f32.mrf.mxu0
    %v734 = vadd.f32 %v721, %v733
    %v735 = vpop.f32.mrf.mxu0
    %736 = vdwg.mxu0
    %737 = vmatpush.bf16.msra.mxu0 %v563
    %738 = vmatpush.bf16.msra.mxu0 %v561
    %739 = vmatpush.bf16.msra.mxu0 %v559
    %740 = vmatpush.bf16.msra.mxu0 %v557
    %741 = vmatpush.bf16.msra.mxu0 %v555
    %742 = vmatpush.bf16.msra.mxu0 %v553
    %743 = vmatpush.bf16.msra.mxu0 %v551
    %744 = vmatpush.bf16.msra.mxu0 %v549
    %745 = vmatmul.bf16.gmra.mxu0 %v84
    %v746 = vpop.f32.mrf.mxu0
    %v747 = vadd.f32 %v734, %v746
    %v748 = vpop.f32.mrf.mxu0
    %749 = vdwg.mxu0
    %750 = vmatpush.bf16.msra.mxu0 %v579
    %751 = vmatpush.bf16.msra.mxu0 %v577
    %752 = vmatpush.bf16.msra.mxu0 %v575
    %753 = vmatpush.bf16.msra.mxu0 %v573
    %754 = vmatpush.bf16.msra.mxu0 %v571
    %755 = vmatpush.bf16.msra.mxu0 %v569
    %756 = vmatpush.bf16.msra.mxu0 %v567
    %757 = vmatpush.bf16.msra.mxu0 %v565
    %758 = vmatmul.bf16.gmra.mxu0 %v85
    %v759 = vpop.f32.mrf.mxu0
    %v760 = vadd.f32 %v747, %v759
    %v761 = vpop.f32.mrf.mxu0
    %762 = vdwg.mxu0
    %763 = vmatpush.bf16.msra.mxu0 0
    %764 = vmatpush.bf16.msra.mxu0 0
    %765 = vmatpush.bf16.msra.mxu0 0
    %766 = vmatpush.bf16.msra.mxu0 0
    %767 = vmatpush.bf16.msra.mxu0 0
    %768 = vmatpush.bf16.msra.mxu0 0
    %769 = vmatpush.bf16.msra.mxu0 0
    %770 = vmatpush.bf16.msra.mxu0 %v581
    %771 = vmatmul.bf16.gmra.mxu0 %v683
    %v772 = vpop.f32.mrf.mxu0
    %v773 = vadd.f32 %v760, %v772
    %v774 = vpop.f32.mrf.mxu0
    %775 = vdwg.mxu0
    %776 = vmatpush.bf16.msra.mxu0 %v500
    %777 = vmatpush.bf16.msra.mxu0 %v498
    %778 = vmatpush.bf16.msra.mxu0 %v496
    %779 = vmatpush.bf16.msra.mxu0 %v494
    %780 = vmatpush.bf16.msra.mxu0 %v492
    %781 = vmatpush.bf16.msra.mxu0 %v490
    %782 = vmatpush.bf16.msra.mxu0 %v488
    %783 = vmatpush.bf16.msra.mxu0 %v486
    %784 = vmatmul.bf16.gmra.mxu0 %v80
    %v785 = vpop.f32.mrf.mxu0
    %v786 = vadd.f32 %v188, %v785
    %v787 = vpop.f32.mrf.mxu0
    %788 = vdwg.mxu0
    %789 = vmatpush.bf16.msra.mxu0 %v516
    %790 = vmatpush.bf16.msra.mxu0 %v514
    %791 = vmatpush.bf16.msra.mxu0 %v512
    %792 = vmatpush.bf16.msra.mxu0 %v510
    %793 = vmatpush.bf16.msra.mxu0 %v508
    %794 = vmatpush.bf16.msra.mxu0 %v506
    %795 = vmatpush.bf16.msra.mxu0 %v504
    %796 = vmatpush.bf16.msra.mxu0 %v502
    %797 = vmatmul.bf16.gmra.mxu0 %v81
    %v798 = vpop.f32.mrf.mxu0
    %v799 = vadd.f32 %v786, %v798
    %v800 = vpop.f32.mrf.mxu0
    %801 = vdwg.mxu0
    %802 = vmatpush.bf16.msra.mxu0 %v532
    %803 = vmatpush.bf16.msra.mxu0 %v530
    %804 = vmatpush.bf16.msra.mxu0 %v528
    %805 = vmatpush.bf16.msra.mxu0 %v526
    %806 = vmatpush.bf16.msra.mxu0 %v524
    %807 = vmatpush.bf16.msra.mxu0 %v522
    %808 = vmatpush.bf16.msra.mxu0 %v520
    %809 = vmatpush.bf16.msra.mxu0 %v518
    %810 = vmatmul.bf16.gmra.mxu0 %v82
    %v811 = vpop.f32.mrf.mxu0
    %v812 = vadd.f32 %v799, %v811
    %v813 = vpop.f32.mrf.mxu0
    %814 = vdwg.mxu0
    %815 = vmatpush.bf16.msra.mxu0 %v548
    %816 = vmatpush.bf16.msra.mxu0 %v546
    %817 = vmatpush.bf16.msra.mxu0 %v544
    %818 = vmatpush.bf16.msra.mxu0 %v542
    %819 = vmatpush.bf16.msra.mxu0 %v540
    %820 = vmatpush.bf16.msra.mxu0 %v538
    %821 = vmatpush.bf16.msra.mxu0 %v536
    %822 = vmatpush.bf16.msra.mxu0 %v534
    %823 = vmatmul.bf16.gmra.mxu0 %v83
    %v824 = vpop.f32.mrf.mxu0
    %v825 = vadd.f32 %v812, %v824
    %v826 = vpop.f32.mrf.mxu0
    %827 = vdwg.mxu0
    %828 = vmatpush.bf16.msra.mxu0 %v564
    %829 = vmatpush.bf16.msra.mxu0 %v562
    %830 = vmatpush.bf16.msra.mxu0 %v560
    %831 = vmatpush.bf16.msra.mxu0 %v558
    %832 = vmatpush.bf16.msra.mxu0 %v556
    %833 = vmatpush.bf16.msra.mxu0 %v554
    %834 = vmatpush.bf16.msra.mxu0 %v552
    %835 = vmatpush.bf16.msra.mxu0 %v550
    %836 = vmatmul.bf16.gmra.mxu0 %v84
    %v837 = vpop.f32.mrf.mxu0
    %v838 = vadd.f32 %v825, %v837
    %v839 = vpop.f32.mrf.mxu0
    %840 = vdwg.mxu0
    %841 = vmatpush.bf16.msra.mxu0 %v580
    %842 = vmatpush.bf16.msra.mxu0 %v578
    %843 = vmatpush.bf16.msra.mxu0 %v576
    %844 = vmatpush.bf16.msra.mxu0 %v574
    %845 = vmatpush.bf16.msra.mxu0 %v572
    %846 = vmatpush.bf16.msra.mxu0 %v570
    %847 = vmatpush.bf16.msra.mxu0 %v568
    %848 = vmatpush.bf16.msra.mxu0 %v566
    %849 = vmatmul.bf16.gmra.mxu0 %v85
    %v850 = vpop.f32.mrf.mxu0
    %v851 = vadd.f32 %v838, %v850
    %v852 = vpop.f32.mrf.mxu0
    %853 = vdwg.mxu0
    %854 = vmatpush.bf16.msra.mxu0 0
    %855 = vmatpush.bf16.msra.mxu0 0
    %856 = vmatpush.bf16.msra.mxu0 0
    %857 = vmatpush.bf16.msra.mxu0 0
    %858 = vmatpush.bf16.msra.mxu0 0
    %859 = vmatpush.bf16.msra.mxu0 0
    %860 = vmatpush.bf16.msra.mxu0 0
    %861 = vmatpush.bf16.msra.mxu0 %v582
    %862 = vmatmul.bf16.gmra.mxu0 %v683
    %v863 = vpop.f32.mrf.mxu0
    %v864 = vadd.f32 %v851, %v863
    %v865 = vpop.f32.mrf.mxu0
    %866 = vdwg.mxu0
    %v867 = vtanh.pop %v773
    %v868 = vtanh.pop %v864
    %v871 = vrot.slane %v868, 6
    %vm872 = vcmask 1041408
    %v873 = vsel %vm872, %v867, %v871
    %875 = vst [vmem:[#allocation8] sm:$0xf] %v873
    // Predicated region
    $region26: #{tpu_custom_call.1} parent=1 // pred_check
      _
    $region27: #{tpu_custom_call.1} parent=1 // pred_check_branch
      %877 = sbr.rel (0) target = $region29
    $region28: #{tpu_custom_call.1} parent=1 // pred_region
      %879 = vsyncadd [#allocation4], 0
      %s881 = sshll.u32 [#allocation8], 4
      %s882 = int_to_ptr.vmem [resolvable:$true] %s881
      %s883 = sshll.u32 %s3, 4
      %s884 = int_to_ptr.hbm [resolvable:$true] %s883
      %886 = dma.vmem_to_hbm [thread:$0]  %s882, 64, %s884, [#allocation4]
    $region29: #{tpu_custom_call.1} parent=1 // pred_fallthru
      _
    // Predicated region
    $region30: #{tpu_custom_call.1} parent=1 // pred_check
      _
    $region31: #{tpu_custom_call.1} parent=1 // pred_check_branch
      %888 = sbr.rel (0) target = $region33
    $region32: #{tpu_custom_call.1} parent=1 // pred_region
      %890 = dma.done [#allocation4], 64
    $region33: #{tpu_custom_call.1} parent=1 // pred_fallthru
      _
    %891 = vsyncpa [#allocation3], 1
    %892 = vsyncpa [#allocation6], 1
    %893 = vsyncpa [#allocation4], 1

</llo_original>
